<compile_context>
chip_gen: v6e
topology: v6e:2x2x1
jax: 0.10.0
libtpu: 0.0.40
codegen_flags: <defaults>
</compile_context>

<pallas_src>
import jax
import jax.numpy as jnp
from jax.experimental import pallas as pl
from jax.experimental.pallas import tpu as pltpu


def _round_up(x, m):
    return (x + m - 1) // m * m


def _linear_kernel(x_ref, w_ref, b_ref, o_ref):
    # x_ref: (TM, D) VMEM tile, w_ref: (D, 1) VMEM (resident), b_ref: (1,) SMEM.
    o_ref[...] = (
        jnp.dot(x_ref[...], w_ref[...], preferred_element_type=jnp.float32)
        + b_ref[0]
    )


def _pick_block_rows(n, d, *, vmem_tile_budget_bytes=16 * 1024 * 1024):
    """Largest row tile (multiple of 8) whose double-buffered f32 input fits budget."""
    tm = vmem_tile_budget_bytes // max(1, 2 * d * 4)  # 2x double-buffer, 4 B/f32
    tm = max(8, min(tm, 4096))
    tm = (tm // 8) * 8
    tm = min(tm, _round_up(n, 8))
    return max(8, tm)


def fused_linear_forward(x, w, b):
    """y = x @ w + b via a single row-tiled, pipelined Pallas kernel.

    x: (N, D) f32, w: (D, 1) f32, b: (1,) f32 -> (N, 1) f32
    """
    n, d = x.shape
    tm = _pick_block_rows(n, d)
    n_pad = _round_up(n, tm)
    if n_pad != n:
        x = jnp.pad(x, ((0, n_pad - n), (0, 0)))

    out = pl.pallas_call(
        _linear_kernel,
        out_shape=jax.ShapeDtypeStruct((n_pad, 1), jnp.float32),
        grid_spec=pltpu.PrefetchScalarGridSpec(
            num_scalar_prefetch=0,
            grid=(n_pad // tm,),
            in_specs=[
                pl.BlockSpec((tm, d), lambda i: (i, 0)),            # streamed rows
                pl.BlockSpec((d, 1), lambda i: (0, 0)),             # weight, resident
                pl.BlockSpec(memory_space=pltpu.MemorySpace.SMEM),  # bias scalar
            ],
            out_specs=pl.BlockSpec((tm, 1), lambda i: (i, 0)),
        ),
        compiler_params=pltpu.CompilerParams(
            dimension_semantics=("parallel",),   # v7x: shard row tiles over 2 TCs
            vmem_limit_bytes=32 * 1024 * 1024,   # safe on v7x (64 MiB phys), > v5e default
        ),
    )(x, w, b)
    return out[:n]


@jax.jit
def linear_regression_forward(params, x_total, x_black, x_non_black):
    """Replicates linearRegression.forward: one shared linear layer, three inputs.

    Fused into a single pallas_call by concatenating rows (removes 2 of 3
    kernel launches and the redundant weight/bias DMAs), then slicing the
    three predictions back out.
    """
    w, b = params["weight"], params["bias"]
    n1, n2 = x_total.shape[0], x_black.shape[0]
    x_all = jnp.concatenate([x_total, x_black, x_non_black], axis=0)
    y_all = fused_linear_forward(x_all, w, b)
    return y_all[:n1], y_all[n1:n1 + n2], y_all[n1 + n2:]


def init_params(size, key):
    """Deterministic init mimicking nn.Linear(size, 1): U(-1/sqrt(size), 1/sqrt(size))."""
    kw, kb = jax.random.split(key)
    bound = 1.0 / jnp.sqrt(jnp.float32(size))
    # nn.Linear weight is (1, size); store transposed as (size, 1) for the kernel.
    weight = jax.random.uniform(kw, (size, 1), jnp.float32, -bound, bound)
    bias = jax.random.uniform(kb, (1,), jnp.float32, -bound, bound)
    return {"weight": weight, "bias": bias}


if __name__ == "__main__":
    # NOTE: at these demo shapes plain jnp would beat any custom kernel; the
    # Pallas path is written for the N-in-the-thousands regime and run here
    # only to validate correctness.
    size = 32
    n_total, n_black, n_non_black = 8, 8, 8

    key = jax.random.PRNGKey(0)
    k_params, k1, k2, k3 = jax.random.split(key, 4)

    params = init_params(size, k_params)
    x_total = jax.random.normal(k1, (n_total, size), jnp.float32)
    x_black = jax.random.normal(k2, (n_black, size), jnp.float32)
    x_non_black = jax.random.normal(k3, (n_non_black, size), jnp.float32)

    y_pred, y_pred_black, y_pred_non_black = linear_regression_forward(
        params, x_total, x_black, x_non_black
    )
    jax.block_until_ready((y_pred, y_pred_black, y_pred_non_black))

    # Reference check against plain JAX (same semantics as nn.Linear).
    w, b = params["weight"], params["bias"]
    refs = (x_total @ w + b, x_black @ w + b, x_non_black @ w + b)
    outs = (y_pred, y_pred_black, y_pred_non_black)
    assert y_pred.shape == (n_total, 1)
    assert y_pred_black.shape == (n_black, 1)
    assert y_pred_non_black.shape == (n_non_black, 1)
    for got, ref in zip(outs, refs):
        assert jnp.allclose(got, ref, atol=1e-5), "mismatch vs reference"

    print("KERNEL_OK")
</pallas_src>

<mosaic_0001>
module attributes {stable_mosaic.version = 11 : i64} {
  func.func @_linear_kernel(%arg0: i32, %arg1: memref<24x32xf32, #tpu.memory_space<vmem>>, %arg2: memref<32x1xf32, #tpu.memory_space<vmem>>, %arg3: memref<1xf32, #tpu.memory_space<smem>>, %arg4: memref<24x1xf32, #tpu.memory_space<vmem>>) attributes {dimension_semantics = [#tpu.dimension_semantics<parallel>], iteration_bounds = array<i64: 1>, scalar_prefetch = 0 : i64, scratch_operands = 0 : i64, tpu.core_type = #tpu.core_type<tc>, window_params = [{transform_indices = @transform_0, window_bounds = array<i64: 24, 32>}, {pipeline_mode = #tpu.pipeline_mode<synchronous>, transform_indices = @transform_1, window_bounds = array<i64: 32, 1>}, {transform_indices = @transform_2, window_bounds = array<i64: 1>}, {transform_indices = @transform_3, window_bounds = array<i64: 24, 1>}]} {
    %c0 = arith.constant 0 : index
    %c0_0 = arith.constant 0 : index
    %0 = vector.load %arg1[%c0, %c0_0] : memref<24x32xf32, #tpu.memory_space<vmem>>, vector<24x32xf32>
    %c0_1 = arith.constant 0 : index
    %c0_2 = arith.constant 0 : index
    %1 = vector.load %arg2[%c0_1, %c0_2] : memref<32x1xf32, #tpu.memory_space<vmem>>, vector<32x1xf32>
    %cst = arith.constant dense<0.000000e+00> : vector<24x1xf32>
    %2 = tpu.matmul %0, %1, %cst {dimension_numbers = #tpu.dot_dimension_numbers<[1], [0], [0], [1], [0, 0, 1, 1], [], []>} : vector<24x32xf32>, vector<32x1xf32>, vector<24x1xf32> -> vector<24x1xf32>
    %c0_3 = arith.constant 0 : index
    %3 = memref.load %arg3[%c0_3] : memref<1xf32, #tpu.memory_space<smem>>
    %4 = vector.broadcast %3 : f32 to vector<24x1xf32>
    %5 = arith.addf %2, %4 : vector<24x1xf32>
    %c0_4 = arith.constant 0 : index
    %c0_5 = arith.constant 0 : index
    %6 = vector.load %arg4[%c0_4, %c0_5] : memref<24x1xf32, #tpu.memory_space<vmem>>, vector<24x1xf32>
    tpu.vector_store %arg4[%c0_4, %c0_5], %5 {strides = array<i32>} : memref<24x1xf32, #tpu.memory_space<vmem>>, vector<24x1xf32>,
    return
  }
  func.func @transform_0(%arg0: i32) -> (i32, i32) {
    %c0_i32 = arith.constant 0 : i32
    %c0_i32_0 = arith.constant 0 : i32
    return %arg0, %c0_i32 : i32, i32
  }
  func.func @transform_1(%arg0: i32) -> (i32, i32) {
    %c0_i32 = arith.constant 0 : i32
    %c0_i32_0 = arith.constant 0 : i32
    %c0_i32_1 = arith.constant 0 : i32
    return %c0_i32, %c0_i32_0 : i32, i32
  }
  func.func @transform_2(%arg0: i32) -> i32 {
    %c0_i32 = arith.constant 0 : i32
    %c0_i32_0 = arith.constant 0 : i32
    return %c0_i32 : i32
  }
  func.func @transform_3(%arg0: i32) -> (i32, i32) {
    %c0_i32 = arith.constant 0 : i32
    %c0_i32_0 = arith.constant 0 : i32
    return %arg0, %c0_i32 : i32, i32
  }
}

</mosaic_0001>

<llo_original>
// kernel: linear_regression_forward.1
$region0: #{linear_regression_forward.1}
  #allocation0 [shape = 'u32[]', space=smem, size = 0x4, offset = 0x4, fixed_abs, tag = 'smem constant byte address 0x4 - core index']
  #allocation1 [shape = 'u32[144,128]{1,0:T(1,128)}', space=vmem, size = 0x12000, scoped, tag = 'internal scratch']
  #allocation2 [shape = 'f32[1]{0:T(128)S(6)}', space=smem, size = 0x200, scoped, tag = 'scoped memory for linear_regression_forward.1']
  %s0 = inlined_call_operand.vmem [shape: f32[24,32], index: 0, kind: input, shape index: {}]
  %s1 = inlined_call_operand.vmem [shape: f32[32,1], index: 1, kind: input, shape index: {}]
  %s2 = inlined_call_operand.<no memory space> [shape: f32[1], index: 2, kind: input, shape index: {}]
  %s3 = inlined_call_operand.vmem [shape: f32[24,1], index: 3, kind: output, shape index: {}]
  %s4 = sld [smem:[#allocation0]]
  $region22: #{linear_regression_forward.1} parent=0
    _
  %s6 = ssub.s32 1, %s4
  %s7 = scalar_select 0, %s6, %s4
  %8 = sst [smem:[#allocation2]] %s2
  // Predicated region
  $region2: #{linear_regression_forward.1} parent=0 // pred_check
    _
  $region3: #{linear_regression_forward.1} parent=0 // pred_check_branch
    %10 = sbr.rel (0) target = $region5
  $region4: #{linear_regression_forward.1} parent=0 // pred_region
    _
  $region5: #{linear_regression_forward.1} parent=0 // pred_fallthru
    _
  // Predicated region
  $region6: #{linear_regression_forward.1} parent=0 // pred_check
    _
  $region7: #{linear_regression_forward.1} parent=0 // pred_check_branch
    %12 = sbr.rel (0) target = $region9
  $region8: #{linear_regression_forward.1} parent=0 // pred_region
    _
  $region9: #{linear_regression_forward.1} parent=0 // pred_fallthru
    _
  // Predicated region
  $region10: #{linear_regression_forward.1} parent=0 // pred_check
    _
  $region11: #{linear_regression_forward.1} parent=0 // pred_check_branch
    %14 = sbr.rel (0) target = $region13
  $region12: #{linear_regression_forward.1} parent=0 // pred_region
    _
  $region13: #{linear_regression_forward.1} parent=0 // pred_fallthru
    _
  %v15 = vld [vmem:[%s0] sm:$0xff]
  %v16 = vld [vmem:[%s0 + $0x8] sm:$0xff]
  %v17 = vld [vmem:[%s0 + $0x10] sm:$0xff]
  %v18 = vld [vmem:[%s1] sm:$0xff]
  %v19 = vld [vmem:[%s1 + $0x8] sm:$0xff]
  %v20 = vld [vmem:[%s1 + $0x10] sm:$0xff]
  %v21 = vld [vmem:[%s1 + $0x18] sm:$0xff]
  %s22 = sld [smem:[#allocation2]]
  %v23 = vstv %s22
  %vm24 = vcmask 261120
  %v26 = vsel %vm24, %v15, 0
  %v29 = vsel %vm24, %v16, 0
  %v32 = vsel %vm24, %v17, 0
  %34 = vmatprep.subr.mxu0 0.0
  %35 = vmatpush1.msra.mxu0 0.0
  %36 = vmatprep.subr.mxu0 0.0
  %37 = vmatpush1.msra.mxu0 0.0
  %38 = vmatprep.subr.mxu0 0.0
  %39 = vmatpush1.msra.mxu0 0.0
  %40 = vmatprep.subr.mxu0 0.0
  %41 = vmatpush1.msra.mxu0 0.0
  %42 = vmatprep.subr.mxu0 0.0
  %43 = vmatpush1.msra.mxu0 0.0
  %44 = vmatprep.subr.mxu0 0.0
  %45 = vmatpush1.msra.mxu0 0.0
  %46 = vmatprep.subr.mxu0 0.0
  %47 = vmatpush1.msra.mxu0 0.0
  %48 = vmatprep.subr.mxu0 0.0
  %49 = vmatpush1.msra.mxu0 0.0
  %50 = vmatprep.subr.mxu0 0.0
  %51 = vmatpush1.msra.mxu0 0.0
  %52 = vmatprep.subr.mxu0 0.0
  %53 = vmatpush1.msra.mxu0 0.0
  %54 = vmatprep.subr.mxu0 0.0
  %55 = vmatpush1.msra.mxu0 0.0
  %56 = vmatprep.subr.mxu0 0.0
  %57 = vmatpush1.msra.mxu0 0.0
  %58 = vmatprep.subr.mxu0 0.0
  %59 = vmatpush1.msra.mxu0 %v21
  %60 = vmatprep.subr.mxu0 0.0
  %61 = vmatpush1.msra.mxu0 %v20
  %62 = vmatprep.subr.mxu0 0.0
  %63 = vmatpush1.msra.mxu0 %v19
  %64 = vmatprep.subr.mxu0 0.0
  %65 = vmatpush1.msra.mxu0 %v18
  %66 = vmatprep.subr.mxu0 0.0
  %67 = vmatpush2.msra.mxu0 0.0
  %68 = vmatprep.subr.mxu0 0.0
  %69 = vmatpush2.msra.mxu0 0.0
  %70 = vmatprep.subr.mxu0 0.0
  %71 = vmatpush2.msra.mxu0 0.0
  %72 = vmatprep.subr.mxu0 0.0
  %73 = vmatpush2.msra.mxu0 0.0
  %74 = vmatprep.subr.mxu0 0.0
  %75 = vmatpush2.msra.mxu0 0.0
  %76 = vmatprep.subr.mxu0 0.0
  %77 = vmatpush2.msra.mxu0 0.0
  %78 = vmatprep.subr.mxu0 0.0
  %79 = vmatpush2.msra.mxu0 0.0
  %80 = vmatprep.subr.mxu0 0.0
  %81 = vmatpush2.msra.mxu0 0.0
  %82 = vmatprep.subr.mxu0 0.0
  %83 = vmatpush2.msra.mxu0 0.0
  %84 = vmatprep.subr.mxu0 0.0
  %85 = vmatpush2.msra.mxu0 0.0
  %86 = vmatprep.subr.mxu0 0.0
  %87 = vmatpush2.msra.mxu0 0.0
  %88 = vmatprep.subr.mxu0 0.0
  %89 = vmatpush2.msra.mxu0 0.0
  %90 = vmatprep.subr.mxu0 0.0
  %91 = vmatpush2.msra.mxu0 0.0
  %92 = vmatprep.subr.mxu0 0.0
  %93 = vmatpush2.msra.mxu0 0.0
  %94 = vmatprep.subr.mxu0 0.0
  %95 = vmatpush2.msra.mxu0 0.0
  %96 = vmatprep.subr.mxu0 0.0
  %97 = vmatpush2.msra.mxu0 0.0
  %98 = vmatprep.mubr.f32.mxu0 0.0
  %99 = vmatmul.mubr.f32.gmra.mxu0 %v26
  %v100 = vpop.f32.mrf.mxu0
  %v101 = vadd.f32 %v23, %v100
  %v102 = vpop.f32.mrf.mxu0
  %103 = vmatprep.mubr.f32.mxu0 0.0
  %104 = vmatmul.mubr.f32.gmra.mxu0 %v29
  %v105 = vpop.f32.mrf.mxu0
  %v106 = vadd.f32 %v23, %v105
  %v107 = vpop.f32.mrf.mxu0
  %108 = vmatprep.mubr.f32.mxu0 0.0
  %109 = vmatmul.mubr.f32.gmra.mxu0 %v32
  %v110 = vpop.f32.mrf.mxu0
  %v111 = vadd.f32 %v23, %v110
  %v112 = vpop.f32.mrf.mxu0
  %113 = vdwg.mxu0
  %vm114 = vcmask 7168
  %115 = vst.msk [vmem:[%s3] sm:$0xff] %vm114, %v101
  %116 = vst.msk [vmem:[%s3 + $0x8] sm:$0xff] %vm114, %v106
  %117 = vst.msk [vmem:[%s3 + $0x10] sm:$0xff] %vm114, %v111
  // Predicated region
  $region14: #{linear_regression_forward.1} parent=0 // pred_check
    _
  $region15: #{linear_regression_forward.1} parent=0 // pred_check_branch
    %119 = sbr.rel (0) target = $region17
  $region16: #{linear_regression_forward.1} parent=0 // pred_region
    _
  $region17: #{linear_regression_forward.1} parent=0 // pred_fallthru
    _
  // Predicated region
  $region18: #{linear_regression_forward.1} parent=0 // pred_check
    _
  $region19: #{linear_regression_forward.1} parent=0 // pred_check_branch
    %121 = sbr.rel (0) target = $region21
  $region20: #{linear_regression_forward.1} parent=0 // pred_region
    _
  $region21: #{linear_regression_forward.1} parent=0 // pred_fallthru
    _

</llo_original>
